<compile_context>
chip_gen: v7x
topology: tpu7x:2x2x1
jax: 0.10.0
libtpu: 0.0.40
codegen_flags: <defaults>
</compile_context>

<pallas_src>
import functools

import jax
import jax.numpy as jnp
from jax.experimental import pallas as pl
from jax.experimental.pallas import tpu as pltpu


# ---------------------------------------------------------------------------
# Kernel body
# ---------------------------------------------------------------------------
def _expert_embed_kernel(x_ref, pos_ref, cls_ref, out_ref, *, sd, lane_aligned):
    """One batch-row tile per grid step (flattened, lane-dense 2D layout).

    x_ref:   (Bt, S*D)       input tokens for this batch tile
    pos_ref: (1,  S*D)       positional embedding head (grid-invariant)
    cls_ref: (1,  C*D)       class_token + pos-embedding tail, folded (grid-invariant)
    out_ref: (Bt, (S+C)*D)   concatenated tokens + positional embedding
    """
    bt = x_ref.shape[0]
    cd = cls_ref.shape[1]
    # token part: x + pos_head; (1, S*D) operand broadcasts over the sublane/batch axis
    tok = x_ref[...] + pos_ref[...]
    # class part: batch-invariant fused constant replicated over the batch tile
    cls = jnp.broadcast_to(cls_ref[...], (bt, cd))
    if lane_aligned:
        # concat seam sits on a 128-lane boundary -> single unmasked full-tile store
        out_ref[...] = jnp.concatenate([tok, cls], axis=-1)
    else:
        # seam not lane aligned: two lane-sliced stores (masked only at the seam)
        out_ref[:, pl.ds(0, sd)] = tok
        out_ref[:, pl.ds(sd, cd)] = cls


# ---------------------------------------------------------------------------
# Generation-aware sizing helpers
# ---------------------------------------------------------------------------
def _sublane(dtype):
    # sublane packing: f32 -> 8 rows / vreg, bf16 -> 16, int8/fp8 -> 32
    return {4: 8, 2: 16, 1: 32}.get(jnp.dtype(dtype).itemsize, 8)


def _buffered_once_supported():
    """pl.Buffered(1) on grid-invariant BlockSpecs (avoids dead double-buffer VMEM)."""
    if not hasattr(pl, "Buffered"):
        return False
    try:
        pl.BlockSpec((8, 128), lambda i: (0, 0), pipeline_mode=pl.Buffered(1))
        return True
    except TypeError:
        return False


_SINGLE_BUFFER_CONSTS = _buffered_once_supported()


def _const_spec(shape):
    """BlockSpec for a grid-invariant (broadcast) input; single-buffered when possible."""
    idx = lambda i: (0, 0)
    if _SINGLE_BUFFER_CONSTS:
        return pl.BlockSpec(shape, idx, pipeline_mode=pl.Buffered(1))
    return pl.BlockSpec(shape, idx)


def _compiler_params(**kw):
    cp = getattr(pltpu, "CompilerParams", None)
    if cp is None:  # very old jax naming fallback
        cp = getattr(pltpu, "TPUCompilerParams")
    return cp(**kw)


@functools.lru_cache(maxsize=1)
def _gen_params():
    """(output-block byte target, VMEM limit ceiling) for the current TPU generation."""
    try:
        kind = jax.devices()[0].device_kind.lower()
    except Exception:  # pragma: no cover - defensive
        kind = ""
    try:
        phys_vmem = int(getattr(pltpu.get_tpu_info(), "vmem_capacity_bytes", 128 << 20))
    except Exception:  # pragma: no cover - defensive
        phys_vmem = (64 << 20) if "v7" in kind else (128 << 20)

    if "v7" in kind or phys_vmem <= (64 << 20):
        # v7x: 3.2 TB/s/TC makes the fixed per-step overhead a bigger fraction, so use
        # blocks > 4 MiB, but VMEM is only 64 MiB -> keep total request <= ~48 MiB.
        return 7 << 20, 48 << 20
    if "v6" in kind:
        # v6e: 128 MiB VMEM; measured elementwise kernels keep gaining to ~1024-wide blocks.
        return 12 << 20, 96 << 20
    # v5e (and older): 4 MiB blocks already ~9 us/step at ~0.82 TB/s; step overhead <5%.
    return 4 << 20, 64 << 20


def _choose_batch_tile(b, sd, td, dtype, block_target, vmem_tile_budget, single_buf):
    """Pick a sublane-aligned batch-row tile.

    Budgets the REAL per-step VMEM working set: double-buffered input (sd) + output
    (td) tiles plus the sublane-padded grid-invariant pos/cls buffers. Also caps the
    tile so the grid has >=2 (>=4 for large B) steps for megacore sharding, and
    prefers tiles that divide B (uniform unmasked stores on every step).
    """
    sub = _sublane(dtype)
    item = jnp.dtype(dtype).itemsize
    if b <= sub:
        return b  # full-batch block: always a legal block shape

    # target output block size
    bt = max(sub, block_target // (td * item))

    # full per-step working set must fit the budget
    fixed = sub * td * item * (1 if single_buf else 2)   # padded pos+cls buffers
    per_row = 2 * (sd + td) * item                       # double-buffered in + out
    max_rows = max(sub, (vmem_tile_budget - fixed) // per_row)
    bt = min(bt, max_rows)

    # megacore: keep >=2 grid steps (>=4 when B is large) so both v7x TCs get work
    min_steps = 4 if b >= 4 * sub else 2
    bt = min(bt, -(-b // min_steps))

    bt = max(sub, (bt // sub) * sub)   # sublane aligned
    bt = min(bt, b)

    # prefer a tile that divides B (avoid a ragged masked final block)
    if b % bt != 0:
        cand = bt
        lo = max(sub, (bt // 2 // sub) * sub)
        while cand >= lo:
            if b % cand == 0:
                bt = cand
                break
            cand -= sub
    return bt


# ---------------------------------------------------------------------------
# Wrapper
# ---------------------------------------------------------------------------
def expert_embed(x, pos_head, cls_plus_pos, *, batch_tile=None, out_dtype=None):
    """concat(class_token) + positional-embedding add, as one Pallas kernel.

    x:            (B, S, D)
    pos_head:     (1, S, D)   pos_embedding[:, :S, :]
    cls_plus_pos: (1, C, D)   class_token + pos_embedding[:, S:, :]  (folded at init)
    returns:      (B, S + C, D) in `out_dtype` (defaults to x.dtype)
    """
    b, s, d = x.shape
    c = cls_plus_pos.shape[1]
    total = s + c
    dtype = jnp.dtype(out_dtype) if out_dtype is not None else x.dtype
    item = dtype.itemsize
    sd, cd, td = s * d, c * d, total * d

    # Lane-dense 2D layout: last dim = S*D / (S+C)*D instead of D.
    # TODO(synk): the whole embed (and this cast, if x is not already `dtype`) should be
    # fused into the transformer's first kernel prologue (LayerNorm/QKV load path) to
    # remove this standalone HBM round trip; `transformer` is opaque here.
    x2d = x.astype(dtype).reshape(b, sd)
    pos2d = pos_head.astype(dtype).reshape(1, sd)
    cls2d = cls_plus_pos.astype(dtype).reshape(1, cd)

    block_target, vmem_cap = _gen_params()
    sub = _sublane(dtype)
    if batch_tile is None:
        batch_tile = _choose_batch_tile(
            b, sd, td, dtype, block_target, vmem_cap - (8 << 20), _SINGLE_BUFFER_CONSTS
        )

    # Actual per-step VMEM need (double-buffered in/out tiles + padded const buffers),
    # plus headroom, capped at a generation-aware ceiling (48 MiB on v7x's 64 MiB VMEM).
    const_rows = sub * (1 if _SINGLE_BUFFER_CONSTS else 2)
    need = 2 * batch_tile * (sd + td) * item + const_rows * td * item
    vmem_limit = int(min(vmem_cap, max(need + (4 << 20), 16 << 20)))

    # concat seam on a 128-lane boundary -> single unmasked full-tile store
    lane_aligned = (sd % 128 == 0) and (cd % 128 == 0)
    kernel = functools.partial(_expert_embed_kernel, sd=sd, lane_aligned=lane_aligned)

    out2d = pl.pallas_call(
        kernel,
        out_shape=jax.ShapeDtypeStruct((b, td), dtype),
        grid=(pl.cdiv(b, batch_tile),),
        in_specs=[
            pl.BlockSpec((batch_tile, sd), lambda i: (i, 0)),  # x: per batch tile
            _const_spec((1, sd)),                              # pos head: grid-invariant
            _const_spec((1, cd)),                              # cls + pos tail: grid-invariant
        ],
        out_specs=pl.BlockSpec((batch_tile, td), lambda i: (i, 0)),
        compiler_params=_compiler_params(
            # NOTE: if profiling on v7x shows one TensorCore idle, switch this axis to
            # pltpu.CORE_PARALLEL (or pl.core_map) — "parallel" is the portable default.
            dimension_semantics=("parallel",),
            vmem_limit_bytes=vmem_limit,
        ),
    )(x2d, pos2d, cls2d)
    return out2d.reshape(b, total, d)


class ExpertLayerPallas:
    """JAX/Pallas port of ExpertLayer.

    `transformer` / `downsample` are externally injected modules in the PyTorch source
    with no definition here; they default to identity / None.
    """

    def __init__(self, dim, num_cls, seq_len, key,
                 transformer=None, downsample=None, dtype=jnp.float32):
        self.transformer = transformer
        self.downsample = downsample
        # nn.init.constant_(class_token, 0)
        self.class_token = jnp.zeros((1, num_cls, dim), dtype=dtype)
        # nn.init.normal_(pos_embedding, std=0.02); seq_len += num_cls
        total = seq_len + num_cls
        self.pos_embedding = (0.02 * jax.random.normal(key, (1, total, dim))).astype(dtype)
        # Fold the batch-invariant class part once at init:
        #   cls_plus_pos = class_token + pos_embedding[:, S:, :]
        self.pos_head = self.pos_embedding[:, :seq_len, :]
        self.cls_plus_pos = self.class_token + self.pos_embedding[:, seq_len:, :]

    def __call__(self, x, *, batch_tile=None):
        b, c = x.shape[:2]
        # concat class tokens + add positional embedding (single Pallas kernel),
        # computed in the layer's dtype (bf16 layer -> bf16 traffic).
        x = expert_embed(x, self.pos_head, self.cls_plus_pos,
                         batch_tile=batch_tile, out_dtype=self.pos_embedding.dtype)
        # TODO(synk): `transformer` is an externally injected module with no definition
        # in the source; identity is used here. For production, fuse the embed above into
        # the transformer's first LayerNorm/QKV kernel prologue to remove an HBM round trip.
        if self.transformer is not None:
            x = self.transformer(x)
        x, expert = x[:, :c], x[:, c:, :]
        attn_dict = None
        # TODO(synk): `downsample` is an externally injected module with no definition
        # in the source; skipped (None) here.
        if self.downsample is not None:
            x, attn_dict = self.downsample(x, expert)
        return x, expert, attn_dict


# ---------------------------------------------------------------------------
# Self-test
# ---------------------------------------------------------------------------
if __name__ == "__main__":
    key = jax.random.PRNGKey(0)
    k_x, k_pos, k_x2, k_x3, k_x4 = jax.random.split(key, 5)

    B, S, D, NUM_CLS = 2, 16, 32, 4
    layer = ExpertLayerPallas(dim=D, num_cls=NUM_CLS, seq_len=S, key=k_pos)

    def ref_embed(xx, lyr):
        bb = xx.shape[0]
        cat = jnp.concatenate(
            [xx.astype(lyr.pos_embedding.dtype),
             jnp.broadcast_to(lyr.class_token, (bb, NUM_CLS, D))],
            axis=1,
        ) + lyr.pos_embedding
        return cat[:, :S], cat[:, S:, :]

    # 1) small f32 case (single full-batch block)
    x = jax.random.normal(k_x, (B, S, D), dtype=jnp.float32)
    tokens, expert, attn_dict = layer(x)
    tokens = jax.block_until_ready(tokens)
    expert = jax.block_until_ready(expert)
    rt, re = ref_embed(x, layer)
    assert tokens.shape == (B, S, D) and expert.shape == (B, NUM_CLS, D)
    assert jnp.allclose(tokens, rt, atol=1e-6)
    assert jnp.allclose(expert, re, atol=1e-6)
    assert attn_dict is None

    # 2) multi-step tiled path (batch tile divides B evenly)
    B2 = 24
    x2 = jax.random.normal(k_x2, (B2, S, D), dtype=jnp.float32)
    t2, e2, _ = layer(x2, batch_tile=8)
    t2 = jax.block_until_ready(t2)
    r2t, r2e = ref_embed(x2, layer)
    assert jnp.allclose(t2, r2t, atol=1e-6) and jnp.allclose(e2, r2e, atol=1e-6)

    # 3) ragged final block: B % batch_tile != 0 (clipped last-step writeback)
    B3 = 10
    x3 = jax.random.normal(k_x3, (B3, S, D), dtype=jnp.float32)
    t3, e3, _ = layer(x3, batch_tile=8)
    t3 = jax.block_until_ready(t3)
    r3t, r3e = ref_embed(x3, layer)
    assert jnp.allclose(t3, r3t, atol=1e-6) and jnp.allclose(e3, r3e, atol=1e-6)

    # 4) bf16 path (halved HBM traffic; kernel add performed in bf16)
    layer16 = ExpertLayerPallas(dim=D, num_cls=NUM_CLS, seq_len=S, key=k_pos,
                                dtype=jnp.bfloat16)
    x4 = jax.random.normal(k_x4, (4, S, D), dtype=jnp.bfloat16)
    t4, e4, _ = layer16(x4)
    t4 = jax.block_until_ready(t4)
    r4t, r4e = ref_embed(x4, layer16)
    assert t4.dtype == jnp.bfloat16 and e4.dtype == jnp.bfloat16
    assert jnp.allclose(t4.astype(jnp.float32), r4t.astype(jnp.float32), atol=2e-2)
    assert jnp.allclose(e4.astype(jnp.float32), r4e.astype(jnp.float32), atol=2e-2)

    print("KERNEL_OK")
</pallas_src>

<mosaic_0001>
module attributes {stable_mosaic.version = 11 : i64} {
  func.func @_expert_embed_kernel(%arg0: i32, %arg1: memref<2x512xf32, #tpu.memory_space<vmem>>, %arg2: memref<1x512xf32, #tpu.memory_space<vmem>>, %arg3: memref<1x128xf32, #tpu.memory_space<vmem>>, %arg4: memref<2x640xf32, #tpu.memory_space<vmem>>) attributes {dimension_semantics = [#tpu.dimension_semantics<parallel>], iteration_bounds = array<i64: 1>, scalar_prefetch = 0 : i64, scratch_operands = 0 : i64, tpu.core_type = #tpu.core_type<tc>, window_params = [{transform_indices = @transform_0, window_bounds = array<i64: 2, 512>}, {pipeline_mode = #tpu.pipeline_mode<synchronous>, transform_indices = @transform_1, window_bounds = array<i64: 1, 512>}, {pipeline_mode = #tpu.pipeline_mode<synchronous>, transform_indices = @transform_2, window_bounds = array<i64: 1, 128>}, {transform_indices = @transform_3, window_bounds = array<i64: 2, 640>}]} {
    %c0 = arith.constant 0 : index
    %c0_0 = arith.constant 0 : index
    %0 = vector.load %arg1[%c0, %c0_0] : memref<2x512xf32, #tpu.memory_space<vmem>>, vector<2x512xf32>
    %c0_1 = arith.constant 0 : index
    %c0_2 = arith.constant 0 : index
    %1 = vector.load %arg2[%c0_1, %c0_2] : memref<1x512xf32, #tpu.memory_space<vmem>>, vector<1x512xf32>
    %2 = vector.broadcast %1 : vector<1x512xf32> to vector<2x512xf32>
    %3 = arith.addf %0, %2 : vector<2x512xf32>
    %c0_3 = arith.constant 0 : index
    %c0_4 = arith.constant 0 : index
    %4 = vector.load %arg3[%c0_3, %c0_4] : memref<1x128xf32, #tpu.memory_space<vmem>>, vector<1x128xf32>
    %5 = vector.shape_cast %4 : vector<1x128xf32> to vector<1x128xf32>
    %6 = vector.broadcast %5 : vector<1x128xf32> to vector<2x128xf32>
    %7 = tpu.concatenate %3, %6 in 1 : vector<2x512xf32>, vector<2x128xf32> -> vector<2x640xf32>
    %c0_5 = arith.constant 0 : index
    %c0_6 = arith.constant 0 : index
    %8 = vector.load %arg4[%c0_5, %c0_6] : memref<2x640xf32, #tpu.memory_space<vmem>>, vector<2x640xf32>
    tpu.vector_store %arg4[%c0_5, %c0_6], %7 {strides = array<i32>} : memref<2x640xf32, #tpu.memory_space<vmem>>, vector<2x640xf32>,
    return
  }
  func.func @transform_0(%arg0: i32) -> (i32, i32) {
    %c0_i32 = arith.constant 0 : i32
    %c0_i32_0 = arith.constant 0 : i32
    return %arg0, %c0_i32 : i32, i32
  }
  func.func @transform_1(%arg0: i32) -> (i32, i32) {
    %c0_i32 = arith.constant 0 : i32
    %c0_i32_0 = arith.constant 0 : i32
    %c0_i32_1 = arith.constant 0 : i32
    return %c0_i32, %c0_i32_0 : i32, i32
  }
  func.func @transform_2(%arg0: i32) -> (i32, i32) {
    %c0_i32 = arith.constant 0 : i32
    %c0_i32_0 = arith.constant 0 : i32
    %c0_i32_1 = arith.constant 0 : i32
    return %c0_i32, %c0_i32_0 : i32, i32
  }
  func.func @transform_3(%arg0: i32) -> (i32, i32) {
    %c0_i32 = arith.constant 0 : i32
    %c0_i32_0 = arith.constant 0 : i32
    return %arg0, %c0_i32 : i32, i32
  }
}

</mosaic_0001>

<llo_original>
// kernel: tpu_custom_call.1
$region0: #{tpu_custom_call.1}
  #allocation0 [shape = 'u32[]', space=smem, size = 0x4, offset = 0x4, fixed_abs, tag = 'smem constant byte address 0x4 - core index']
  #allocation1 [shape = 'u32[144,128]{1,0:T(1,128)}', space=vmem, size = 0x12000, scoped, tag = 'internal scratch']
  %s0 = inlined_call_operand.hbm [shape: f32[2,512], index: 0, kind: input, shape index: {}]
  %s1 = inlined_call_operand.hbm [shape: f32[1,512], index: 1, kind: input, shape index: {}]
  %s2 = inlined_call_operand.vmem [shape: f32[1,128], index: 2, kind: input, shape index: {}]
  %s3 = inlined_call_operand.hbm [shape: f32[2,640], index: 3, kind: output, shape index: {}]
  %s4 = sld [smem:[#allocation0]]
  $region30: #{tpu_custom_call.1} parent=0
    _
  %s6 = ssub.s32 1, %s4
  %s7 = scalar_select 0, %s6, %s4
  $region1: #{tpu_custom_call.1} parent=0
    #allocation2 [shape = 'u8[4096]{0}', space=vmem, size = 0x1000, scoped, tag = 'input window, operand 0, single buffered']
    #allocation3 [shape = 's32[1]{0}', space=sflag, size = 0x4, scoped, tag = 'scoped memory for tpu_custom_call.1']
    #allocation4 [shape = 's32[1]{0}', space=sflag, size = 0x4, scoped, tag = 'scoped memory for tpu_custom_call.1']
    #allocation5 [shape = 'u8[2048]{0}', space=vmem, size = 0x800, scoped, tag = 'input window, operand 1, single buffered']
    #allocation6 [shape = 's32[1]{0}', space=sflag, size = 0x4, scoped, tag = 'scoped memory for tpu_custom_call.1']
    #allocation7 [shape = 'u8[5120]{0}', space=vmem, size = 0x1400, scoped, tag = 'output window, operand 0, single buffered']
    %8 = vsyncpa [#allocation3], 0
    %9 = vsyncpa [#allocation6], 0
    %10 = vsyncpa [#allocation4], 0
    // Predicated region
    $region2: #{tpu_custom_call.1} parent=1 // pred_check
      _
    $region3: #{tpu_custom_call.1} parent=1 // pred_check_branch
      %12 = sbr.rel (0) target = $region5
    $region4: #{tpu_custom_call.1} parent=1 // pred_region
      %s14 = ssub.s32 128, 128
      %15 = vsyncadd [#allocation3], %s14
      %s17 = sshll.u32 [#allocation2], 4
      %s18 = int_to_ptr.vmem [resolvable:$true] %s17
      %20 = dma.hbm_to_vmem [thread:$0]  %s0, 128, %s18, [#allocation3]
    $region5: #{tpu_custom_call.1} parent=1 // pred_fallthru
      _
    // Predicated region
    $region6: #{tpu_custom_call.1} parent=1 // pred_check
      _
    $region7: #{tpu_custom_call.1} parent=1 // pred_check_branch
      %22 = sbr.rel (0) target = $region9
    $region8: #{tpu_custom_call.1} parent=1 // pred_region
      %s24 = ssub.s32 64, 64
      %25 = vsyncadd [#allocation6], %s24
      %s27 = sshll.u32 [#allocation5], 4
      %s28 = int_to_ptr.vmem [resolvable:$true] %s27
      %30 = dma.hbm_to_vmem [thread:$0]  %s1, 64, %s28, [#allocation6]
    $region9: #{tpu_custom_call.1} parent=1 // pred_fallthru
      _
    // Predicated region
    $region10: #{tpu_custom_call.1} parent=1 // pred_check
      _
    $region11: #{tpu_custom_call.1} parent=1 // pred_check_branch
      %32 = sbr.rel (0) target = $region13
    $region12: #{tpu_custom_call.1} parent=1 // pred_region
      _
    $region13: #{tpu_custom_call.1} parent=1 // pred_fallthru
      _
    // Predicated region
    $region14: #{tpu_custom_call.1} parent=1 // pred_check
      _
    $region15: #{tpu_custom_call.1} parent=1 // pred_check_branch
      %34 = sbr.rel (0) target = $region17
    $region16: #{tpu_custom_call.1} parent=1 // pred_region
      %35 = dma.done [#allocation3], 128
    $region17: #{tpu_custom_call.1} parent=1 // pred_fallthru
      _
    // Predicated region
    $region18: #{tpu_custom_call.1} parent=1 // pred_check
      _
    $region19: #{tpu_custom_call.1} parent=1 // pred_check_branch
      %37 = sbr.rel (0) target = $region21
    $region20: #{tpu_custom_call.1} parent=1 // pred_region
      %38 = dma.done [#allocation6], 64
    $region21: #{tpu_custom_call.1} parent=1 // pred_fallthru
      _
    %v39 = vld [vmem:[#allocation2] sm:$0xff]
    %v40 = vld [vmem:[#allocation5] sm:$0xf]
    %v42 = vlaneseq
    %v43 = vshrl.u32 %v42, 7
    %v44 = vsub.s32 0, %v43
    %v45 = vrot.slane %v40, %v44
    %v46 = vlaneseq
    %v47 = vshrl.u32 %v46, 7
    %v48 = vsub.s32 1, %v47
    %v49 = vrot.slane %v40, %v48
    %v50 = vlaneseq
    %v51 = vshrl.u32 %v50, 7
    %v52 = vsub.s32 2, %v51
    %v53 = vrot.slane %v40, %v52
    %v54 = vlaneseq
    %v55 = vshrl.u32 %v54, 7
    %v56 = vsub.s32 3, %v55
    %v57 = vrot.slane %v40, %v56
    %v58 = vcombine.low %v45, %v49
    %v59 = vcombine.low %v53, %v57
    %v61 = vunpack.c.l.s4 1983009808
    %v62 = vunpack.c.0.s8 %v61
    %v63 = vlaneseq
    %v64 = vshrl.u32 %v63, 7
    %v65 = vsub.s32 %v62, %v64
    %v66 = vrot.slane %v58, %v65
    %v68 = vunpack.c.l.s4 1983009808
    %v69 = vunpack.c.0.s8 %v68
    %v70 = vlaneseq
    %v71 = vshrl.u32 %v70, 7
    %v72 = vsub.s32 %v69, %v71
    %v73 = vrot.slane %v59, %v72
    %v74 = vcombine.low %v66, %v73
    %v76 = vadd.f32 %v39, %v74
    %v77 = vld [vmem:[%s2] sm:$0x1]
    %v79 = vlaneseq
    %v80 = vshrl.u32 %v79, 7
    %v81 = vsub.s32 0, %v80
    %v82 = vrot.slane %v77, %v81
    %v84 = vcombine.high %v76, %v76
    %v86 = vunpack.c.l.s4 1983009808
    %v87 = vunpack.c.0.s8 %v86
    %v88 = vlaneseq
    %v89 = vshrl.u32 %v88, 7
    %v90 = vsub.s32 %v87, %v89
    %v91 = vrot.slane %v76, %v90
    %v93 = vunpack.c.l.s4 1983009808
    %v94 = vunpack.c.0.s8 %v93
    %v95 = vlaneseq
    %v96 = vshrl.u32 %v95, 7
    %v97 = vsub.s32 %v94, %v96
    %v98 = vrot.slane %v84, %v97
    %v99 = vcombine.high %v91, %v91
    %v100 = vcombine.high %v98, %v98
    %v101 = vcombine.low %v91, %v99
    %v102 = vcombine.low %v98, %v100
    %v104 = vunpack.c.l.s4 1983009808
    %v105 = vunpack.c.0.s8 %v104
    %v106 = vlaneseq
    %v107 = vshrl.u32 %v106, 7
    %v108 = vsub.s32 %v105, %v107
    %v109 = vrot.slane %v101, %v108
    %v111 = vunpack.c.l.s4 1983009808
    %v112 = vunpack.c.0.s8 %v111
    %v113 = vlaneseq
    %v114 = vshrl.u32 %v113, 7
    %v115 = vsub.s32 %v112, %v114
    %v116 = vrot.slane %v102, %v115
    %v117 = vcombine.low %v109, %v116
    %v119 = vunpack.c.l.s4 1983009808
    %v120 = vunpack.c.0.s8 %v119
    %v121 = vlaneseq
    %v122 = vshrl.u32 %v121, 7
    %v123 = vsub.s32 %v120, %v122
    %v124 = vrot.slane %v82, %v123
    %127 = vst [vmem:[#allocation7] sm:$0xff] %v117
    %128 = vst [vmem:[#allocation7 + $0x8] sm:$0x3] %v124
    // Predicated region
    $region22: #{tpu_custom_call.1} parent=1 // pred_check
      _
    $region23: #{tpu_custom_call.1} parent=1 // pred_check_branch
      %130 = sbr.rel (0) target = $region25
    $region24: #{tpu_custom_call.1} parent=1 // pred_region
      %s132 = ssub.s32 160, 160
      %133 = vsyncadd [#allocation4], %s132
      %s135 = sshll.u32 [#allocation7], 4
      %s136 = int_to_ptr.vmem [resolvable:$true] %s135
      %138 = dma.vmem_to_hbm [thread:$0]  %s136, 160, %s3, [#allocation4]
    $region25: #{tpu_custom_call.1} parent=1 // pred_fallthru
      _
    // Predicated region
    $region26: #{tpu_custom_call.1} parent=1 // pred_check
      _
    $region27: #{tpu_custom_call.1} parent=1 // pred_check_branch
      %140 = sbr.rel (0) target = $region29
    $region28: #{tpu_custom_call.1} parent=1 // pred_region
      %141 = dma.done [#allocation4], 160
    $region29: #{tpu_custom_call.1} parent=1 // pred_fallthru
      _
    %142 = vsyncpa [#allocation3], 1
    %143 = vsyncpa [#allocation6], 1
    %144 = vsyncpa [#allocation4], 1

</llo_original>
